<compile_context>
chip_gen: v5e
topology: v5e:2x2
jax: 0.10.0
libtpu: 0.0.40
codegen_flags: <defaults>
</compile_context>

<pallas_src>
import jax
import jax.numpy as jnp
from jax import lax
from jax.experimental import pallas as pl
from jax.experimental.pallas import tpu as pltpu


def _round_up(v: int, m: int) -> int:
    return ((v + m - 1) // m) * m


def _lmc_kernel(x_ref, y_ref, w1_ref, b1_ref, w2_ref, b2_ref, o_ref):
    """out = (x @ W1^T + b1) * (y @ W2^T + b2) for one (TB, TN) output tile."""
    # Contract dim 1 of both operands: (TB, R) x (TN, R) -> (TB, TN); keeps the
    # PyTorch (out, in) weight layout so the wrapper never transposes weights.
    dn = (((1,), (1,)), ((), ()))
    a = lax.dot_general(x_ref[...], w1_ref[...], dn,
                        preferred_element_type=jnp.float32) + b1_ref[...]
    b = lax.dot_general(y_ref[...], w2_ref[...], dn,
                        preferred_element_type=jnp.float32) + b2_ref[...]
    # TODO(synk): when MXU-bound (f32 inputs, R >~ 512) and the model tolerates
    # it, cast the dot operands / stored weights to bf16 (keep f32 accumulate).
    o_ref[...] = (a * b).astype(o_ref.dtype)


_VMEM_BUDGET = 40 * 1024 * 1024        # conservative across v5e/v6e (128 MiB) and v7x (64 MiB)
_DEFAULT_SCOPED_VMEM = 32 * 1024 * 1024


def _tile_footprint_bytes(TB: int, TN: int, R: int, itemsize: int) -> int:
    """Pipeline VMEM footprint: every BlockSpec operand is double-buffered."""
    acts = 2 * 2 * TB * R * itemsize          # x, y tiles (2 bufs each)
    outs = 2 * TB * TN * itemsize             # out tile
    wts = 2 * 2 * TN * R * itemsize           # w1, w2 blocks (2 bufs each)
    bias = 2 * 2 * 1 * TN * itemsize          # b1, b2 blocks
    # TODO(synk): constant-index weight/bias specs only need one buffer;
    # pl.Buffered(1) (or memory_space=pl.ANY + a single sync_copy) would halve
    # `wts` and push full-weight residency to larger R.
    return acts + outs + wts + bias


def _choose_tiles(B: int, R: int, itemsize: int) -> tuple[int, int]:
    # Batch tile: big tiles for HBM-bound small R (measured on v6e: 128-row
    # tiles -> ~29% of HBM roofline, 512 -> ~85%, 1024 -> ~86%); cdiv grid
    # pads the ragged last block so TB need not divide B.
    cap = 1024 if R <= 256 else 512
    TB = min(cap, _round_up(B, 8))
    if B > 256:
        # Keep >= 2 batch grid steps so v7x's second TensorCore gets work.
        TB = min(TB, _round_up(pl.cdiv(B, 2), 8))

    # Output-column tile: full R while (double-buffered) weights + activation
    # tiles fit the VMEM budget, otherwise tile N in multiples of 128.
    TN = R
    while (_tile_footprint_bytes(TB, TN, R, itemsize) > _VMEM_BUDGET
           and R > 128 and TN > 128):
        TN = max(128, ((TN // 2) // 128) * 128)
    while _tile_footprint_bytes(TB, TN, R, itemsize) > _VMEM_BUDGET and TB > 8:
        TB = max(8, _round_up(TB // 2, 8))
    return TB, TN


@jax.jit
def linear_multiplication_composition(x, y, w1, b1, w2, b2):
    """x, y: (B, R); w1, w2: (R, R) PyTorch (out, in) layout; b1, b2: (R,)."""
    B, R = x.shape
    assert y.shape == (B, R) and w1.shape == (R, R) and w2.shape == (R, R)
    assert b1.shape == (R,) and b2.shape == (R,)
    assert x.dtype == y.dtype == w1.dtype == w2.dtype, "operand dtypes must match"

    itemsize = jnp.dtype(x.dtype).itemsize
    TB, TN = _choose_tiles(B, R, itemsize)

    # Grid: N (output columns) outer, batch inner -> each weight block is
    # DMA'd once per N step and stays VMEM-resident across the batch loop.
    grid = (pl.cdiv(R, TN), pl.cdiv(B, TB))

    needed = _tile_footprint_bytes(TB, TN, R, itemsize)
    vmem_limit = None
    if needed > _DEFAULT_SCOPED_VMEM:
        vmem_limit = min(needed + (8 << 20), 56 << 20)

    return pl.pallas_call(
        _lmc_kernel,
        out_shape=jax.ShapeDtypeStruct((B, R), x.dtype),
        grid=grid,
        in_specs=[
            pl.BlockSpec((TB, R), lambda j, i: (i, 0)),   # x batch tile
            pl.BlockSpec((TB, R), lambda j, i: (i, 0)),   # y batch tile
            pl.BlockSpec((TN, R), lambda j, i: (j, 0)),   # W1 row-block (resident over batch)
            pl.BlockSpec((1, TN), lambda j, i: (0, j)),   # b1 block
            pl.BlockSpec((TN, R), lambda j, i: (j, 0)),   # W2 row-block (resident over batch)
            pl.BlockSpec((1, TN), lambda j, i: (0, j)),   # b2 block
        ],
        out_specs=pl.BlockSpec((TB, TN), lambda j, i: (i, j)),
        compiler_params=pltpu.CompilerParams(
            dimension_semantics=("parallel", "parallel"),
            vmem_limit_bytes=vmem_limit,
        ),
    )(x, y, w1, b1.reshape(1, R), w2, b2.reshape(1, R))


if __name__ == "__main__":
    B = 8            # batch
    R = 32           # representation_size

    key = jax.random.PRNGKey(0)
    kx, ky, kw1, kb1, kw2, kb2 = jax.random.split(key, 6)

    x = jax.random.normal(kx, (B, R), dtype=jnp.float32)
    y = jax.random.normal(ky, (B, R), dtype=jnp.float32)

    # PyTorch Linear-style params: W (out, in), b (out,).
    bound = 1.0 / (R ** 0.5)
    w1 = jax.random.uniform(kw1, (R, R), minval=-bound, maxval=bound, dtype=jnp.float32)
    b1 = jax.random.uniform(kb1, (R,), minval=-bound, maxval=bound, dtype=jnp.float32)
    w2 = jax.random.uniform(kw2, (R, R), minval=-bound, maxval=bound, dtype=jnp.float32)
    b2 = jax.random.uniform(kb2, (R,), minval=-bound, maxval=bound, dtype=jnp.float32)

    out = jax.block_until_ready(
        linear_multiplication_composition(x, y, w1, b1, w2, b2))

    # Reference check in plain JAX.
    ref = (x @ w1.T + b1) * (y @ w2.T + b2)
    assert out.shape == (B, R)
    assert jnp.allclose(out, ref, atol=1e-5, rtol=1e-5), "mismatch vs reference"

    print("KERNEL_OK")
</pallas_src>

<mosaic_0001>
module attributes {stable_mosaic.version = 11 : i64} {
  func.func @_lmc_kernel(%arg0: i32, %arg1: i32, %arg2: memref<8x32xf32, #tpu.memory_space<vmem>>, %arg3: memref<8x32xf32, #tpu.memory_space<vmem>>, %arg4: memref<32x32xf32, #tpu.memory_space<vmem>>, %arg5: memref<1x32xf32, #tpu.memory_space<vmem>>, %arg6: memref<32x32xf32, #tpu.memory_space<vmem>>, %arg7: memref<1x32xf32, #tpu.memory_space<vmem>>, %arg8: memref<8x32xf32, #tpu.memory_space<vmem>>) attributes {dimension_semantics = [#tpu.dimension_semantics<parallel>, #tpu.dimension_semantics<parallel>], iteration_bounds = array<i64: 1, 1>, scalar_prefetch = 0 : i64, scratch_operands = 0 : i64, tpu.core_type = #tpu.core_type<tc>, window_params = [{transform_indices = @transform_0, window_bounds = array<i64: 8, 32>}, {transform_indices = @transform_1, window_bounds = array<i64: 8, 32>}, {transform_indices = @transform_2, window_bounds = array<i64: 32, 32>}, {transform_indices = @transform_3, window_bounds = array<i64: 1, 32>}, {transform_indices = @transform_4, window_bounds = array<i64: 32, 32>}, {transform_indices = @transform_5, window_bounds = array<i64: 1, 32>}, {transform_indices = @transform_6, window_bounds = array<i64: 8, 32>}]} {
    %c0 = arith.constant 0 : index
    %c0_0 = arith.constant 0 : index
    %0 = vector.load %arg2[%c0, %c0_0] : memref<8x32xf32, #tpu.memory_space<vmem>>, vector<8x32xf32>
    %c0_1 = arith.constant 0 : index
    %c0_2 = arith.constant 0 : index
    %1 = vector.load %arg4[%c0_1, %c0_2] : memref<32x32xf32, #tpu.memory_space<vmem>>, vector<32x32xf32>
    %cst = arith.constant dense<0.000000e+00> : vector<8x32xf32>
    %2 = tpu.matmul %0, %1, %cst {dimension_numbers = #tpu.dot_dimension_numbers<[1], [1], [0], [0], [0, 0, 1, 0], [], []>} : vector<8x32xf32>, vector<32x32xf32>, vector<8x32xf32> -> vector<8x32xf32>
    %c0_3 = arith.constant 0 : index
    %c0_4 = arith.constant 0 : index
    %3 = vector.load %arg5[%c0_3, %c0_4] : memref<1x32xf32, #tpu.memory_space<vmem>>, vector<1x32xf32>
    %4 = vector.broadcast %3 : vector<1x32xf32> to vector<8x32xf32>
    %5 = arith.addf %2, %4 : vector<8x32xf32>
    %c0_5 = arith.constant 0 : index
    %c0_6 = arith.constant 0 : index
    %6 = vector.load %arg3[%c0_5, %c0_6] : memref<8x32xf32, #tpu.memory_space<vmem>>, vector<8x32xf32>
    %c0_7 = arith.constant 0 : index
    %c0_8 = arith.constant 0 : index
    %7 = vector.load %arg6[%c0_7, %c0_8] : memref<32x32xf32, #tpu.memory_space<vmem>>, vector<32x32xf32>
    %cst_9 = arith.constant dense<0.000000e+00> : vector<8x32xf32>
    %8 = tpu.matmul %6, %7, %cst_9 {dimension_numbers = #tpu.dot_dimension_numbers<[1], [1], [0], [0], [0, 0, 1, 0], [], []>} : vector<8x32xf32>, vector<32x32xf32>, vector<8x32xf32> -> vector<8x32xf32>
    %c0_10 = arith.constant 0 : index
    %c0_11 = arith.constant 0 : index
    %9 = vector.load %arg7[%c0_10, %c0_11] : memref<1x32xf32, #tpu.memory_space<vmem>>, vector<1x32xf32>
    %10 = vector.broadcast %9 : vector<1x32xf32> to vector<8x32xf32>
    %11 = arith.addf %8, %10 : vector<8x32xf32>
    %12 = arith.mulf %5, %11 : vector<8x32xf32>
    %c0_12 = arith.constant 0 : index
    %c0_13 = arith.constant 0 : index
    %13 = vector.load %arg8[%c0_12, %c0_13] : memref<8x32xf32, #tpu.memory_space<vmem>>, vector<8x32xf32>
    tpu.vector_store %arg8[%c0_12, %c0_13], %12 {strides = array<i32>} : memref<8x32xf32, #tpu.memory_space<vmem>>, vector<8x32xf32>,
    return
  }
  func.func @transform_0(%arg0: i32, %arg1: i32) -> (i32, i32) {
    %c0_i32 = arith.constant 0 : i32
    %c0_i32_0 = arith.constant 0 : i32
    return %arg1, %c0_i32 : i32, i32
  }
  func.func @transform_1(%arg0: i32, %arg1: i32) -> (i32, i32) {
    %c0_i32 = arith.constant 0 : i32
    %c0_i32_0 = arith.constant 0 : i32
    return %arg1, %c0_i32 : i32, i32
  }
  func.func @transform_2(%arg0: i32, %arg1: i32) -> (i32, i32) {
    %c0_i32 = arith.constant 0 : i32
    %c0_i32_0 = arith.constant 0 : i32
    return %arg0, %c0_i32 : i32, i32
  }
  func.func @transform_3(%arg0: i32, %arg1: i32) -> (i32, i32) {
    %c0_i32 = arith.constant 0 : i32
    %c0_i32_0 = arith.constant 0 : i32
    return %c0_i32, %arg0 : i32, i32
  }
  func.func @transform_4(%arg0: i32, %arg1: i32) -> (i32, i32) {
    %c0_i32 = arith.constant 0 : i32
    %c0_i32_0 = arith.constant 0 : i32
    return %arg0, %c0_i32 : i32, i32
  }
  func.func @transform_5(%arg0: i32, %arg1: i32) -> (i32, i32) {
    %c0_i32 = arith.constant 0 : i32
    %c0_i32_0 = arith.constant 0 : i32
    return %c0_i32, %arg0 : i32, i32
  }
  func.func @transform_6(%arg0: i32, %arg1: i32) -> (i32, i32) {
    %c0_i32 = arith.constant 0 : i32
    return %arg1, %arg0 : i32, i32
  }
}

</mosaic_0001>

<llo_original>
// kernel: linear_multiplication_composition.1
$region0: #{linear_multiplication_composition.1}
  #allocation0 [shape = 'u32[]', space=smem, size = 0x4, offset = 0x4, fixed_abs, tag = 'smem constant byte address 0x4 - core index']
  #allocation1 [shape = 'u32[72,128]{1,0:T(1,128)}', space=vmem, size = 0x9000, scoped, tag = 'internal scratch']
  %s0 = inlined_call_operand.hbm [shape: f32[8,32], index: 0, kind: input, shape index: {}]
  %s1 = inlined_call_operand.hbm [shape: f32[8,32], index: 1, kind: input, shape index: {}]
  %s2 = inlined_call_operand.hbm [shape: f32[32,32], index: 2, kind: input, shape index: {}]
  %s3 = inlined_call_operand.vmem [shape: f32[1,32], index: 3, kind: input, shape index: {}]
  %s4 = inlined_call_operand.hbm [shape: f32[32,32], index: 4, kind: input, shape index: {}]
  %s5 = inlined_call_operand.vmem [shape: f32[1,32], index: 5, kind: input, shape index: {}]
  %s6 = inlined_call_operand.hbm [shape: f32[8,32], index: 6, kind: output, shape index: {}]
  %s7 = sld [smem:[#allocation0]]
  $region50: #{linear_multiplication_composition.1} parent=0
    _
  %s9 = ssub.s32 1, %s7
  %s10 = scalar_select 0, %s9, %s7
  $region1: #{linear_multiplication_composition.1} parent=0
    #allocation2 [shape = 'u8[4096]{0}', space=vmem, size = 0x1000, scoped, tag = 'input window, operand 0, single buffered']
    #allocation3 [shape = 's32[1]{0}', space=sflag, size = 0x4, scoped, tag = 'scoped memory for linear_multiplication_composition.1']
    #allocation4 [shape = 's32[1]{0}', space=sflag, size = 0x4, scoped, tag = 'scoped memory for linear_multiplication_composition.1']
    #allocation5 [shape = 'u8[4096]{0}', space=vmem, size = 0x1000, scoped, tag = 'input window, operand 1, single buffered']
    #allocation6 [shape = 's32[1]{0}', space=sflag, size = 0x4, scoped, tag = 'scoped memory for linear_multiplication_composition.1']
    #allocation7 [shape = 'u8[16384]{0}', space=vmem, size = 0x4000, scoped, tag = 'input window, operand 2, single buffered']
    #allocation8 [shape = 'u8[16384]{0}', space=vmem, size = 0x4000, scoped, tag = 'input window, operand 4, single buffered']
    #allocation9 [shape = 's32[1]{0}', space=sflag, size = 0x4, scoped, tag = 'scoped memory for linear_multiplication_composition.1']
    #allocation10 [shape = 'u8[4096]{0}', space=vmem, size = 0x1000, scoped, tag = 'output window, operand 0, single buffered']
    %11 = vsyncpa [#allocation3], 0
    %12 = vsyncpa [#allocation6], 0
    %13 = vsyncpa [#allocation9], 0
    %14 = vsyncpa [#allocation4], 0
    // Predicated region
    $region2: #{linear_multiplication_composition.1} parent=1 // pred_check
      _
    $region3: #{linear_multiplication_composition.1} parent=1 // pred_check_branch
      %16 = sbr.rel (0) target = $region5
    $region4: #{linear_multiplication_composition.1} parent=1 // pred_region
      %18 = vsyncadd [#allocation3], 0
      %s20 = sshll.u32 %s0, 4
      %s21 = int_to_ptr.hbm [resolvable:$true] %s20
      %s22 = sshll.u32 [#allocation2], 4
      %s23 = int_to_ptr.vmem [resolvable:$true] %s22
      %25 = dma.hbm_to_vmem [thread:$0]  %s21, 128, %s23, [#allocation3]
    $region5: #{linear_multiplication_composition.1} parent=1 // pred_fallthru
      _
    // Predicated region
    $region6: #{linear_multiplication_composition.1} parent=1 // pred_check
      _
    $region7: #{linear_multiplication_composition.1} parent=1 // pred_check_branch
      %27 = sbr.rel (0) target = $region9
    $region8: #{linear_multiplication_composition.1} parent=1 // pred_region
      %29 = vsyncadd [#allocation6], 0
      %s31 = sshll.u32 %s1, 4
      %s32 = int_to_ptr.hbm [resolvable:$true] %s31
      %s33 = sshll.u32 [#allocation5], 4
      %s34 = int_to_ptr.vmem [resolvable:$true] %s33
      %36 = dma.hbm_to_vmem [thread:$0]  %s32, 128, %s34, [#allocation6]
    $region9: #{linear_multiplication_composition.1} parent=1 // pred_fallthru
      _
    // Predicated region
    $region10: #{linear_multiplication_composition.1} parent=1 // pred_check
      _
    $region11: #{linear_multiplication_composition.1} parent=1 // pred_check_branch
      %38 = sbr.rel (0) target = $region13
    $region12: #{linear_multiplication_composition.1} parent=1 // pred_region
      %40 = vsyncadd [#allocation6], 0
      %s41 = sshll.u32 %s2, 4
      %s42 = int_to_ptr.hbm [resolvable:$true] %s41
      %s43 = sshll.u32 [#allocation7], 4
      %s44 = int_to_ptr.vmem [resolvable:$true] %s43
      %49 = dma.hbm_to_vmem [thread:$0]  %s42, 512, %s44, [#allocation6], 128, 128, 8
    $region13: #{linear_multiplication_composition.1} parent=1 // pred_fallthru
      _
    // Predicated region
    $region14: #{linear_multiplication_composition.1} parent=1 // pred_check
      _
    $region15: #{linear_multiplication_composition.1} parent=1 // pred_check_branch
      %51 = sbr.rel (0) target = $region17
    $region16: #{linear_multiplication_composition.1} parent=1 // pred_region
      _
    $region17: #{linear_multiplication_composition.1} parent=1 // pred_fallthru
      _
    // Predicated region
    $region18: #{linear_multiplication_composition.1} parent=1 // pred_check
      _
    $region19: #{linear_multiplication_composition.1} parent=1 // pred_check_branch
      %53 = sbr.rel (0) target = $region21
    $region20: #{linear_multiplication_composition.1} parent=1 // pred_region
      %55 = vsyncadd [#allocation9], 0
      %s56 = sshll.u32 %s4, 4
      %s57 = int_to_ptr.hbm [resolvable:$true] %s56
      %s58 = sshll.u32 [#allocation8], 4
      %s59 = int_to_ptr.vmem [resolvable:$true] %s58
      %64 = dma.hbm_to_vmem [thread:$0]  %s57, 512, %s59, [#allocation9], 128, 128, 8
    $region21: #{linear_multiplication_composition.1} parent=1 // pred_fallthru
      _
    // Predicated region
    $region22: #{linear_multiplication_composition.1} parent=1 // pred_check
      _
    $region23: #{linear_multiplication_composition.1} parent=1 // pred_check_branch
      %66 = sbr.rel (0) target = $region25
    $region24: #{linear_multiplication_composition.1} parent=1 // pred_region
      _
    $region25: #{linear_multiplication_composition.1} parent=1 // pred_fallthru
      _
    // Predicated region
    $region26: #{linear_multiplication_composition.1} parent=1 // pred_check
      _
    $region27: #{linear_multiplication_composition.1} parent=1 // pred_check_branch
      %68 = sbr.rel (0) target = $region29
    $region28: #{linear_multiplication_composition.1} parent=1 // pred_region
      %70 = dma.done [#allocation3], 128
    $region29: #{linear_multiplication_composition.1} parent=1 // pred_fallthru
      _
    // Predicated region
    $region30: #{linear_multiplication_composition.1} parent=1 // pred_check
      _
    $region31: #{linear_multiplication_composition.1} parent=1 // pred_check_branch
      %72 = sbr.rel (0) target = $region33
    $region32: #{linear_multiplication_composition.1} parent=1 // pred_region
      %74 = dma.done [#allocation6], 128
    $region33: #{linear_multiplication_composition.1} parent=1 // pred_fallthru
      _
    // Predicated region
    $region34: #{linear_multiplication_composition.1} parent=1 // pred_check
      _
    $region35: #{linear_multiplication_composition.1} parent=1 // pred_check_branch
      %76 = sbr.rel (0) target = $region37
    $region36: #{linear_multiplication_composition.1} parent=1 // pred_region
      %78 = dma.done [#allocation6], 512
    $region37: #{linear_multiplication_composition.1} parent=1 // pred_fallthru
      _
    // Predicated region
    $region38: #{linear_multiplication_composition.1} parent=1 // pred_check
      _
    $region39: #{linear_multiplication_composition.1} parent=1 // pred_check_branch
      %80 = sbr.rel (0) target = $region41
    $region40: #{linear_multiplication_composition.1} parent=1 // pred_region
      %82 = dma.done [#allocation9], 512
    $region41: #{linear_multiplication_composition.1} parent=1 // pred_fallthru
      _
    %v83 = vld [vmem:[#allocation2] sm:$0xff]
    %v84 = vld [vmem:[#allocation7] sm:$0xff]
    %v85 = vld [vmem:[#allocation7 + $0x8] sm:$0xff]
    %v86 = vld [vmem:[#allocation7 + $0x10] sm:$0xff]
    %v87 = vld [vmem:[#allocation7 + $0x18] sm:$0xff]
    %v88 = vld [vmem:[%s3] sm:$0x1]
    %v90 = vperm.slane %v88, 0
    %vm92 = vcmask 261120
    %v94 = vsel %vm92, %v83, 0
    %v97 = vsel %vm92, %v84, 0
    %v100 = vsel %vm92, %v85, 0
    %v103 = vsel %vm92, %v86, 0
    %v106 = vsel %vm92, %v87, 0
    %108 = vmatpush.xpose.msra.mxu0 0.0
    %109 = vmatpush.xpose.msra.mxu0 0.0
    %110 = vmatpush.xpose.msra.mxu0 0.0
    %111 = vmatpush.xpose.msra.mxu0 0.0
    %112 = vmatpush.xpose.msra.mxu0 0.0
    %113 = vmatpush.xpose.msra.mxu0 0.0
    %114 = vmatpush.xpose.msra.mxu0 0.0
    %115 = vmatpush.xpose.msra.mxu0 0.0
    %116 = vmatpush.xpose.msra.mxu0 0.0
    %117 = vmatpush.xpose.msra.mxu0 0.0
    %118 = vmatpush.xpose.msra.mxu0 0.0
    %119 = vmatpush.xpose.msra.mxu0 0.0
    %120 = vmatpush.xpose.msra.mxu0 %v106
    %121 = vmatpush.xpose.msra.mxu0 %v103
    %122 = vmatpush.xpose.msra.mxu0 %v100
    %123 = vmatpush.xpose.msra.mxu0 %v97
    %124 = vmatmul.f32.gmra.mxu0 %v94
    %v125 = vpop.f32.mrf.mxu0
    %v126 = vadd.f32 %v90, %v125
    %127 = vdwg.mxu0
    %v128 = vld [vmem:[#allocation5] sm:$0xff]
    %v129 = vld [vmem:[#allocation8] sm:$0xff]
    %v130 = vld [vmem:[#allocation8 + $0x8] sm:$0xff]
    %v131 = vld [vmem:[#allocation8 + $0x10] sm:$0xff]
    %v132 = vld [vmem:[#allocation8 + $0x18] sm:$0xff]
    %v133 = vld [vmem:[%s5] sm:$0x1]
    %v135 = vperm.slane %v133, 0
    %v138 = vsel %vm92, %v128, 0
    %v141 = vsel %vm92, %v129, 0
    %v144 = vsel %vm92, %v130, 0
    %v147 = vsel %vm92, %v131, 0
    %v150 = vsel %vm92, %v132, 0
    %152 = vmatpush.xpose.msra.mxu0 0.0
    %153 = vmatpush.xpose.msra.mxu0 0.0
    %154 = vmatpush.xpose.msra.mxu0 0.0
    %155 = vmatpush.xpose.msra.mxu0 0.0
    %156 = vmatpush.xpose.msra.mxu0 0.0
    %157 = vmatpush.xpose.msra.mxu0 0.0
    %158 = vmatpush.xpose.msra.mxu0 0.0
    %159 = vmatpush.xpose.msra.mxu0 0.0
    %160 = vmatpush.xpose.msra.mxu0 0.0
    %161 = vmatpush.xpose.msra.mxu0 0.0
    %162 = vmatpush.xpose.msra.mxu0 0.0
    %163 = vmatpush.xpose.msra.mxu0 0.0
    %164 = vmatpush.xpose.msra.mxu0 %v150
    %165 = vmatpush.xpose.msra.mxu0 %v147
    %166 = vmatpush.xpose.msra.mxu0 %v144
    %167 = vmatpush.xpose.msra.mxu0 %v141
    %168 = vmatmul.f32.gmra.mxu0 %v138
    %v169 = vpop.f32.mrf.mxu0
    %v170 = vadd.f32 %v135, %v169
    %171 = vdwg.mxu0
    %v172 = vmul.f32 %v126, %v170
    %173 = vst.msk [vmem:[#allocation10] sm:$0xff] %vm92, %v172
    // Predicated region
    $region42: #{linear_multiplication_composition.1} parent=1 // pred_check
      _
    $region43: #{linear_multiplication_composition.1} parent=1 // pred_check_branch
      %175 = sbr.rel (0) target = $region45
    $region44: #{linear_multiplication_composition.1} parent=1 // pred_region
      %177 = vsyncadd [#allocation4], 0
      %s179 = sshll.u32 [#allocation10], 4
      %s180 = int_to_ptr.vmem [resolvable:$true] %s179
      %s181 = sshll.u32 %s6, 4
      %s182 = int_to_ptr.hbm [resolvable:$true] %s181
      %184 = dma.vmem_to_hbm [thread:$0]  %s180, 128, %s182, [#allocation4]
    $region45: #{linear_multiplication_composition.1} parent=1 // pred_fallthru
      _
    // Predicated region
    $region46: #{linear_multiplication_composition.1} parent=1 // pred_check
      _
    $region47: #{linear_multiplication_composition.1} parent=1 // pred_check_branch
      %186 = sbr.rel (0) target = $region49
    $region48: #{linear_multiplication_composition.1} parent=1 // pred_region
      %188 = dma.done [#allocation4], 128
    $region49: #{linear_multiplication_composition.1} parent=1 // pred_fallthru
      _
    %189 = vsyncpa [#allocation3], 1
    %190 = vsyncpa [#allocation6], 1
    %191 = vsyncpa [#allocation9], 1
    %192 = vsyncpa [#allocation4], 1

</llo_original>
